<compile_context>
chip_gen: v7x
topology: tpu7x:2x2x1
jax: 0.10.0
libtpu: 0.0.40
codegen_flags: <defaults>
</compile_context>

<pallas_src>
import jax
import jax.numpy as jnp
from jax.experimental import pallas as pl
from jax.experimental.pallas import tpu as pltpu


# ---------------------------------------------------------------------------
# Tunables
# ---------------------------------------------------------------------------
_BLOCK_BUDGET_BYTES = 6 << 20   # per-block footprint (2x in + 2x out buffers + f32 temp)
_MIN_FAN = 128                  # below this every store is a masked partial vst
_MIN_ELEMS = 256 * 1024         # ~1 MiB f32: below this XLA's fused path wins
_TARGET_ROW_STEPS = 8           # >= 4 grid steps per TensorCore on v7x (2 TCs)
_TARGET_FAN_STEPS = 8
_FEW_ROWS = 16                  # c_out <= this -> fan-tiled path (grid depth)


def _round_up(x: int, m: int) -> int:
    return ((x + m - 1) // m) * m


def _round_down(x: int, m: int) -> int:
    return (x // m) * m


def _vmem_limit_bytes() -> int:
    # Generation-aware VMEM limit: <= 50% of physical VMEM (v7x has only 64 MiB
    # per TensorCore; v5e/v6e have 128 MiB), capped at 32 MiB — ample headroom
    # over the ~6 MiB block budget for compiler scratch and (8,128) padding.
    try:
        cap = pltpu.get_tpu_info().vmem_capacity_bytes
    except Exception:
        cap = 64 << 20
    return min(cap // 2, 32 << 20)


# ---------------------------------------------------------------------------
# Kernels
# ---------------------------------------------------------------------------
def _make_rowwise_kernel(eps: float):
    """Single pass: block spans the full fan; per-row inverse norm + broadcast mul.

    INVARIANT: every op here is strictly row-local (the reduce is along axis -1
    only).  That is what makes a partial last row block safe: the out-of-bounds
    rows of the VMEM block hold undefined data, but they never contaminate
    valid rows and Pallas masks their stores.  Do not add any cross-row op.
    """

    def kernel(w_ref, o_ref):
        w32 = w_ref[...].astype(jnp.float32)
        sq_sum = jnp.sum(w32 * w32, axis=-1, keepdims=True)          # (rows, 1)
        # One reciprocal per row instead of a (rows x fan) divide.
        inv = pl.reciprocal(jnp.sqrt(sq_sum) + eps, approx=False)
        # Re-read + re-cast instead of keeping the f32 copy live across both
        # the reduction and the scale: VMEM re-reads are free (HBM-bound
        # kernel) and this halves the f32 temp footprint for bf16 inputs.
        o_ref[...] = (w_ref[...].astype(jnp.float32) * inv).astype(o_ref.dtype)

    return kernel


def _scale_kernel(w_ref, inv_ref, o_ref):
    """Fan-tiled broadcast multiply: out = w * inv_norm (per row)."""
    o_ref[...] = (w_ref[...].astype(jnp.float32) * inv_ref[...]).astype(o_ref.dtype)


# ---------------------------------------------------------------------------
# Reference (mirrors the PyTorch module's _normalize)
# ---------------------------------------------------------------------------
def weight_norm_ref(w: jax.Array, eps: float = 1e-4) -> jax.Array:
    axes = tuple(range(1, w.ndim))
    n = jnp.sqrt(jnp.sum(jnp.square(w), axis=axes, keepdims=True))
    return w / (n + eps)


# ---------------------------------------------------------------------------
# Wrapper
# ---------------------------------------------------------------------------
def weight_norm(w: jax.Array, eps: float = 1e-4, *,
                max_block_elems: int | None = None) -> jax.Array:
    """Pallas equivalent of _WeigthNorm()._normalize(w) (eval-mode forward).

    max_block_elems: optional override of the per-block element budget
    (used by tests to force the fan-tiled path).
    """
    orig_shape = w.shape
    c_out = orig_shape[0]
    fan = 1
    for d in orig_shape[1:]:
        fan *= d

    # Tiny / narrow weights: a standalone pallas_call (launch + ~0.35 us/step
    # pipeline overhead) is slower than XLA's fused reduce+scale.
    if fan < _MIN_FAN or c_out * fan < _MIN_ELEMS:
        return weight_norm_ref(w, eps)

    w2d = w.reshape(c_out, fan)
    itemsize = jnp.dtype(w.dtype).itemsize
    # Per-element footprint of one block: double-buffered input + double-buffered
    # output (itemsize each) + one live f32 temporary.
    bytes_per_elem = 4 * itemsize + 4
    if max_block_elems is None:
        max_block_elems = _BLOCK_BUDGET_BYTES // bytes_per_elem

    vmem_limit = _vmem_limit_bytes()
    full_fan_fits = fan * min(8, c_out) <= max_block_elems

    if full_fan_fits and c_out > _FEW_ROWS:
        # ------------------ Single-pass, row-tiled path ---------------------
        rows_fit = max(8, _round_down(max_block_elems // fan, 8))
        # Aim for >= _TARGET_ROW_STEPS grid steps, rounded to an EVEN count so
        # v7x's two TensorCores each get the same number of blocks, while
        # staying within the per-block budget.
        n_steps = max(_TARGET_ROW_STEPS, pl.cdiv(c_out, rows_fit))
        n_steps += n_steps % 2
        tile_rows = min(rows_fit, _round_up(pl.cdiv(c_out, n_steps), 8))

        out2d = pl.pallas_call(
            _make_rowwise_kernel(eps),
            out_shape=jax.ShapeDtypeStruct((c_out, fan), w.dtype),
            grid=(pl.cdiv(c_out, tile_rows),),
            in_specs=[pl.BlockSpec((tile_rows, fan), lambda i: (i, 0))],
            out_specs=pl.BlockSpec((tile_rows, fan), lambda i: (i, 0)),
            compiler_params=pltpu.CompilerParams(
                dimension_semantics=("parallel",),
                vmem_limit_bytes=vmem_limit,
            ),
        )(w2d)
        return out2d.reshape(orig_shape)

    # -------------- Fan-tiled path (huge fan, or very few rows) -------------
    # Per-row inverse norm as a plain XLA row reduce: the output is tiny
    # (c_out x 1), the 2-reads+1-write HBM traffic on w is inherent anyway, and
    # this avoids a second Pallas launch whose output would be lane-width-1
    # masked stores.
    sq = jnp.sum(jnp.square(w2d.astype(jnp.float32)), axis=1, keepdims=True)
    inv = 1.0 / (jnp.sqrt(sq) + eps)                                # (c_out, 1) f32

    tile_rows = min(8, c_out)
    tile_fan = max(128, _round_down(max_block_elems // tile_rows, 128))
    # Keep the fan grid >= _TARGET_FAN_STEPS deep so DMA/compute overlap and
    # (together with the row axis) both v7x TensorCores get work.
    n_fan_steps = max(_TARGET_FAN_STEPS, pl.cdiv(fan, tile_fan))
    tile_fan = min(tile_fan, _round_up(pl.cdiv(fan, n_fan_steps), 128))
    grid = (pl.cdiv(c_out, tile_rows), pl.cdiv(fan, tile_fan))

    out2d = pl.pallas_call(
        _scale_kernel,
        out_shape=jax.ShapeDtypeStruct((c_out, fan), w.dtype),
        grid=grid,
        in_specs=[
            pl.BlockSpec((tile_rows, tile_fan), lambda i, j: (i, j)),
            pl.BlockSpec((tile_rows, 1), lambda i, j: (i, 0)),
        ],
        out_specs=pl.BlockSpec((tile_rows, tile_fan), lambda i, j: (i, j)),
        compiler_params=pltpu.CompilerParams(
            dimension_semantics=("parallel", "parallel"),
            vmem_limit_bytes=vmem_limit,
        ),
    )(w2d, inv)
    return out2d.reshape(orig_shape)


# ---------------------------------------------------------------------------
# Self-test
# ---------------------------------------------------------------------------
if __name__ == "__main__":
    key = jax.random.PRNGKey(0)
    eps = 1e-4
    k1, k2, k3, k4, k5, k6 = jax.random.split(key, 6)

    # 1) conv-style f32 weight (OIHW) -> single-pass Pallas path, ~8-deep grid.
    w1 = jax.random.normal(k1, (256, 128, 3, 3), dtype=jnp.float32)
    o1 = jax.block_until_ready(weight_norm(w1, eps))
    assert o1.shape == w1.shape and o1.dtype == w1.dtype
    assert jnp.allclose(o1, weight_norm_ref(w1, eps), atol=1e-5, rtol=1e-5)

    # 2) bf16 conv weight -> single-pass path, f32 internal math.
    w2 = jax.random.normal(k2, (128, 32, 8, 8), dtype=jnp.float32).astype(jnp.bfloat16)
    o2 = jax.block_until_ready(weight_norm(w2, eps))
    r2 = weight_norm_ref(w2.astype(jnp.float32), eps).astype(jnp.bfloat16)
    assert o2.shape == w2.shape and o2.dtype == w2.dtype
    assert jnp.allclose(o2.astype(jnp.float32), r2.astype(jnp.float32),
                        atol=2e-2, rtol=2e-2)

    # 3) c_out not divisible by the row tile -> partial last row block (masked write).
    w3 = jax.random.normal(k3, (200, 1600), dtype=jnp.float32)
    o3 = jax.block_until_ready(weight_norm(w3, eps))
    assert jnp.allclose(o3, weight_norm_ref(w3, eps), atol=1e-5, rtol=1e-5)

    # 4) tiny weight (fan < 128 / small total) -> pure-JAX guard path.
    w4 = jax.random.normal(k4, (16, 4, 3, 3), dtype=jnp.float32)
    o4 = jax.block_until_ready(weight_norm(w4, eps))
    assert o4.shape == w4.shape and o4.dtype == w4.dtype
    assert jnp.allclose(o4, weight_norm_ref(w4, eps), atol=1e-5, rtol=1e-5)

    # 5) few rows, wide fan -> fan-tiled scale path (grid depth via fan axis).
    w5 = jax.random.normal(k5, (12, 32768), dtype=jnp.float32)
    o5 = jax.block_until_ready(weight_norm(w5, eps))
    assert jnp.allclose(o5, weight_norm_ref(w5, eps), atol=1e-5, rtol=1e-5)

    # 6) force the fan-tiled path with a tiny block budget (last fan tile
    #    partial -> exercises masked partial-lane stores in the scale kernel).
    w6 = jax.random.normal(k6, (64, 5000), dtype=jnp.float32)
    o6 = jax.block_until_ready(weight_norm(w6, eps, max_block_elems=8 * 512))
    assert jnp.allclose(o6, weight_norm_ref(w6, eps), atol=1e-5, rtol=1e-5)

    print("KERNEL_OK")
</pallas_src>

<mosaic_0001>
module attributes {stable_mosaic.version = 11 : i64} {
  func.func @kernel(%arg0: i32, %arg1: memref<32x1152xf32, #tpu.memory_space<vmem>>, %arg2: memref<32x1152xf32, #tpu.memory_space<vmem>>) attributes {dimension_semantics = [#tpu.dimension_semantics<parallel>], iteration_bounds = array<i64: 8>, scalar_prefetch = 0 : i64, scratch_operands = 0 : i64, tpu.core_type = #tpu.core_type<tc>, window_params = [{transform_indices = @transform_0, window_bounds = array<i64: 32, 1152>}, {transform_indices = @transform_1, window_bounds = array<i64: 32, 1152>}]} {
    %c0 = arith.constant 0 : index
    %c0_0 = arith.constant 0 : index
    %0 = vector.load %arg1[%c0, %c0_0] : memref<32x1152xf32, #tpu.memory_space<vmem>>, vector<32x1152xf32>
    %1 = arith.mulf %0, %0 : vector<32x1152xf32>
    %cst = arith.constant dense<0.000000e+00> : vector<32xf32>
    %2 = vector.multi_reduction <add>, %1, %cst [1] : vector<32x1152xf32> to vector<32xf32>
    %3 = vector.shape_cast %2 : vector<32xf32> to vector<32x1xf32>
    %4 = math.sqrt %3 : vector<32x1xf32>
    %cst_1 = arith.constant 9.99999974E-5 : f32
    %5 = vector.broadcast %cst_1 : f32 to vector<32x1xf32>
    %6 = arith.addf %4, %5 : vector<32x1xf32>
    %7 = tpu.reciprocal %6 : vector<32x1xf32> -> vector<32x1xf32>
    %c0_2 = arith.constant 0 : index
    %c0_3 = arith.constant 0 : index
    %8 = vector.load %arg1[%c0_2, %c0_3] : memref<32x1152xf32, #tpu.memory_space<vmem>>, vector<32x1152xf32>
    %9 = vector.broadcast %7 : vector<32x1xf32> to vector<32x1152xf32>
    %10 = arith.mulf %8, %9 : vector<32x1152xf32>
    %c0_4 = arith.constant 0 : index
    %c0_5 = arith.constant 0 : index
    %11 = vector.load %arg2[%c0_4, %c0_5] : memref<32x1152xf32, #tpu.memory_space<vmem>>, vector<32x1152xf32>
    tpu.vector_store %arg2[%c0_4, %c0_5], %10 {strides = array<i32>} : memref<32x1152xf32, #tpu.memory_space<vmem>>, vector<32x1152xf32>,
    return
  }
  func.func @transform_0(%arg0: i32) -> (i32, i32) {
    %c0_i32 = arith.constant 0 : i32
    %c0_i32_0 = arith.constant 0 : i32
    return %arg0, %c0_i32 : i32, i32
  }
  func.func @transform_1(%arg0: i32) -> (i32, i32) {
    %c0_i32 = arith.constant 0 : i32
    %c0_i32_0 = arith.constant 0 : i32
    return %arg0, %c0_i32 : i32, i32
  }
}

</mosaic_0001>

<llo_original>
// kernel: tpu_custom_call.1
$region0: #{tpu_custom_call.1}
  #allocation0 [shape = 'u32[]', space=smem, size = 0x4, offset = 0x4, fixed_abs, tag = 'smem constant byte address 0x4 - core index']
  #allocation1 [shape = 'u32[144,128]{1,0:T(1,128)}', space=vmem, size = 0x12000, scoped, tag = 'internal scratch']
  %s0 = inlined_call_operand.hbm [shape: f32[256,1152], index: 0, kind: input, shape index: {}]
  %s1 = inlined_call_operand.hbm [shape: f32[256,1152], index: 1, kind: output, shape index: {}]
  %s2 = sld [smem:[#allocation0]]
  $region41: #{tpu_custom_call.1} parent=0
    _
  %s4 = ssub.s32 1, %s2
  %s5 = scalar_select 0, %s4, %s2
  $region1: #{tpu_custom_call.1} parent=0
    #allocation2 [shape = 'u8[294912]{0}', space=vmem, size = 0x48000, scoped, tag = 'input window, operand 0']
    #allocation3 [shape = 's32[2]{0}', space=sflag, size = 0x8, scoped, tag = 'scoped memory for tpu_custom_call.1']
    #allocation4 [shape = 's32[2]{0}', space=sflag, size = 0x8, scoped, tag = 'scoped memory for tpu_custom_call.1']
    #allocation5 [shape = 'u8[294912]{0}', space=vmem, size = 0x48000, scoped, tag = 'output window, operand 0']
    %6 = vsyncpa [#allocation3], 0
    %s7 = scalar_lea.sflag [#allocation3], 1
    %8 = vsyncpa %s7, 0
    %9 = vsyncpa [#allocation4], 0
    %s10 = scalar_lea.sflag [#allocation4], 1
    %11 = vsyncpa %s10, 0
    loop: start=0, step=1, limit=10
    $region2: #{tpu_custom_call.1} parent=1 // loop_pre_header
      _
    $region3: #{tpu_custom_call.1} parent=1 // loop_header
      %s13 = sphi 0, %s17
      %p14 = scmp.ge.s32.totalorder %s13, 10
      %s23 = sphi 0, %s25
      %s26 = sphi 0, %s23
      %s27 = sphi 0, %s26
      %s43 = sphi 0, %s27
      %s49 = sphi 0, %s51
      %s52 = sphi 0, %s49
      %s53 = sphi 0, %s52
      %s69 = sphi 0, %s53
    $region4: #{tpu_custom_call.1} parent=1 // loop_header_branch
      %16 = sbr.rel (%p14) target = $region8
    $region5: #{tpu_custom_call.1} parent=1 // loop_body
      %s18 = ssub.s32 %s13, 1
      %s19 = ssub.s32 %s13, 2
      %s20 = sadd.s32 %s13, 1
      %s21 = ssub.s32 %s13, %s20
      %p22 = scmp.eq.s32.totalorder %s21, 0
      %s24 = sadd.s32 %s23, 1
      %s25 = scalar_select %p22, %s23, %s24
      %p28 = pneg %p22
      %p29 = scmp.eq.s32.totalorder %s13, 7
      %p30 = por %p28, %p29
      %p31 = scmp.ne.s32.totalorder %s23, %s26
      %p32 = scmp.eq.s32.totalorder %s13, 0
      %p33 = por %p31, %p32
      %p34 = scmp.ne.s32.totalorder %s23, %s26
      %p35 = scmp.eq.s32.totalorder %s18, 7
      %p36 = por %p34, %p35
      %p37 = scmp.ne.s32.totalorder %s26, %s27
      %p38 = scmp.eq.s32.totalorder %s18, 0
      %p39 = por %p37, %p38
      %p40 = scmp.ne.s32.totalorder %s26, %s27
      %p41 = scmp.eq.s32.totalorder %s19, 7
      %p42 = por %p40, %p41
      %p44 = scmp.ne.s32.totalorder %s27, %s43
      %p45 = scmp.eq.s32.totalorder %s19, 0
      %p46 = por %p44, %p45
      %s47 = ssub.s32 %s13, %s20
      %p48 = scmp.eq.s32.totalorder %s47, 0
      %s50 = sadd.s32 %s49, 1
      %s51 = scalar_select %p48, %s49, %s50
      %p54 = pneg %p48
      %p55 = scmp.eq.s32.totalorder %s13, 7
      %p56 = por %p54, %p55
      %p57 = scmp.ne.s32.totalorder %s49, %s52
      %p58 = scmp.eq.s32.totalorder %s13, 0
      %p59 = por %p57, %p58
      %p60 = scmp.ne.s32.totalorder %s49, %s52
      %p61 = scmp.eq.s32.totalorder %s18, 7
      %p62 = por %p60, %p61
      %p63 = scmp.ne.s32.totalorder %s52, %s53
      %p64 = scmp.eq.s32.totalorder %s18, 0
      %p65 = por %p63, %p64
      %p66 = scmp.ne.s32.totalorder %s52, %s53
      %p67 = scmp.eq.s32.totalorder %s19, 7
      %p68 = por %p66, %p67
      %p70 = scmp.ne.s32.totalorder %s53, %s69
      %p71 = scmp.eq.s32.totalorder %s19, 0
      %p72 = por %p70, %p71
      %p73 = scmp.le.s32.totalorder 1, %s13
      %p74 = scmp.lt.s32.totalorder %s13, 9
      %p75 = pnand %p73, %p74
      %p76 = pneg %p75
      // Predicated region
      $region9: #{tpu_custom_call.1} parent=5 // pred_check
        _
      $region10: #{tpu_custom_call.1} parent=5 // pred_check_branch
        %78 = sbr.rel (%p75) target = $region12
      $region11: #{tpu_custom_call.1} parent=5 // pred_region
        %s79 = ssub.s32 %s13, 1
      $region12: #{tpu_custom_call.1} parent=5 // pred_fallthru
        _
      %p80 = scmp.lt.s32.totalorder %s13, 8
      // Predicated region
      $region13: #{tpu_custom_call.1} parent=5 // pred_check
        %p81 = pneg %p80
      $region14: #{tpu_custom_call.1} parent=5 // pred_check_branch
        %83 = sbr.rel (%p81) target = $region16
      $region15: #{tpu_custom_call.1} parent=5 // pred_region
        // Predicated region
        $region17: #{tpu_custom_call.1} parent=15 // pred_check
          %p84 = pneg %p33
        $region18: #{tpu_custom_call.1} parent=15 // pred_check_branch
          %86 = sbr.rel (%p84) target = $region20
        $region19: #{tpu_custom_call.1} parent=15 // pred_region
          %s87 = sand.u32 %s23, 1
          %s88 = scalar_lea.sflag [#allocation3], %s87
          %s89 = sand.u32 %s23, 1
          %s90 = smul.addr %s89, 288
          %s91 = scalar_lea.vmem [#allocation2], %s90
          %s92 = smul.u32 4, %s13
          %s94 = ssub.s32 4608, 4608
          %95 = vsyncadd %s88, %s94
          %s96 = smul.addr %s92, 9
          %s97 = smul.addr %s96, 128
          %s98 = scalar_lea.hbm %s0, %s97
          %s99 = sshll.u32 %s91, 4
          %s100 = int_to_ptr.vmem [resolvable:$true] %s99
          %105 = dma.hbm_to_vmem [thread:$0]  %s98, 4608, %s100, %s88, 1152, 1152, 72
        $region20: #{tpu_custom_call.1} parent=15 // pred_fallthru
          _
      $region16: #{tpu_custom_call.1} parent=5 // pred_fallthru
        _
      %p106 = scmp.le.s32.totalorder 1, %s13
      %p107 = scmp.lt.s32.totalorder %s13, 9
      %p108 = pnand %p106, %p107
      %p109 = pneg %p108
      // Predicated region
      $region21: #{tpu_custom_call.1} parent=5 // pred_check
        _
      $region22: #{tpu_custom_call.1} parent=5 // pred_check_branch
        %111 = sbr.rel (%p108) target = $region24
      $region23: #{tpu_custom_call.1} parent=5 // pred_region
        %s112 = ssub.s32 %s13, 1
        %s113 = sand.u32 %s26, 1
        %s114 = scalar_lea.sflag [#allocation3], %s113
        %s115 = sand.u32 %s26, 1
        %s116 = smul.addr %s115, 288
        %s117 = scalar_lea.vmem [#allocation2], %s116
        // Predicated region
        $region25: #{tpu_custom_call.1} parent=23 // pred_check
          %p118 = pneg %p39
        $region26: #{tpu_custom_call.1} parent=23 // pred_check_branch
          %120 = sbr.rel (%p118) target = $region28
        $region27: #{tpu_custom_call.1} parent=23 // pred_region
          %121 = dma.done %s114, 4608
        $region28: #{tpu_custom_call.1} parent=23 // pred_fallthru
          _
        %s122 = sand.u32 %s26, 1
        %s123 = scalar_lea.sflag [#allocation3], %s122
        %s124 = sand.u32 %s26, 1
        %s125 = smul.addr %s124, 288
        %s126 = scalar_lea.vmem [#allocation2], %s125
        %p127 = pneg %p39
        %p128 = pneg %p36
        %p129 = pneg %p65
        %p130 = pneg %p62
        %s131 = sand.u32 %s52, 1
        %s132 = scalar_lea.sflag [#allocation4], %s131
        %s133 = sand.u32 %s52, 1
        %s134 = smul.addr %s133, 288
        %s135 = scalar_lea.vmem [#allocation5], %s134
        %s136 = smul.u32 4, %s18
        %s137 = smul.u32 4, %s18
        %v138 = vld [vmem:[%s117] sm:$0xff]
        %v139 = vld [vmem:[%s117 + $0x8] sm:$0xff]
        %v140 = vld [vmem:[%s117 + $0x10] sm:$0xff]
        %v141 = vld [vmem:[%s117 + $0x18] sm:$0xff]
        %v142 = vld [vmem:[%s117 + $0x20] sm:$0xff]
        %v143 = vld [vmem:[%s117 + $0x28] sm:$0xff]
        %v144 = vld [vmem:[%s117 + $0x30] sm:$0xff]
        %v145 = vld [vmem:[%s117 + $0x38] sm:$0xff]
        %v146 = vld [vmem:[%s117 + $0x40] sm:$0xff]
        %v147 = vld [vmem:[%s117 + $0x48] sm:$0xff]
        %v148 = vld [vmem:[%s117 + $0x50] sm:$0xff]
        %v149 = vld [vmem:[%s117 + $0x58] sm:$0xff]
        %v150 = vld [vmem:[%s117 + $0x60] sm:$0xff]
        %v151 = vld [vmem:[%s117 + $0x68] sm:$0xff]
        %v152 = vld [vmem:[%s117 + $0x70] sm:$0xff]
        %v153 = vld [vmem:[%s117 + $0x78] sm:$0xff]
        %v154 = vld [vmem:[%s117 + $0x80] sm:$0xff]
        %v155 = vld [vmem:[%s117 + $0x88] sm:$0xff]
        %v156 = vld [vmem:[%s117 + $0x90] sm:$0xff]
        %v157 = vld [vmem:[%s117 + $0x98] sm:$0xff]
        %v158 = vld [vmem:[%s117 + $0xa0] sm:$0xff]
        %v159 = vld [vmem:[%s117 + $0xa8] sm:$0xff]
        %v160 = vld [vmem:[%s117 + $0xb0] sm:$0xff]
        %v161 = vld [vmem:[%s117 + $0xb8] sm:$0xff]
        %v162 = vld [vmem:[%s117 + $0xc0] sm:$0xff]
        %v163 = vld [vmem:[%s117 + $0xc8] sm:$0xff]
        %v164 = vld [vmem:[%s117 + $0xd0] sm:$0xff]
        %v165 = vld [vmem:[%s117 + $0xd8] sm:$0xff]
        %v166 = vld [vmem:[%s117 + $0xe0] sm:$0xff]
        %v167 = vld [vmem:[%s117 + $0xe8] sm:$0xff]
        %v168 = vld [vmem:[%s117 + $0xf0] sm:$0xff]
        %v169 = vld [vmem:[%s117 + $0xf8] sm:$0xff]
        %v170 = vld [vmem:[%s117 + $0x100] sm:$0xff]
        %v171 = vld [vmem:[%s117 + $0x108] sm:$0xff]
        %v172 = vld [vmem:[%s117 + $0x110] sm:$0xff]
        %v173 = vld [vmem:[%s117 + $0x118] sm:$0xff]
        %v174 = vmul.f32 %v138, %v138
        %v175 = vmul.f32 %v139, %v139
        %v176 = vmul.f32 %v140, %v140
        %v177 = vmul.f32 %v141, %v141
        %v178 = vmul.f32 %v142, %v142
        %v179 = vmul.f32 %v143, %v143
        %v180 = vmul.f32 %v144, %v144
        %v181 = vmul.f32 %v145, %v145
        %v182 = vmul.f32 %v146, %v146
        %v183 = vmul.f32 %v147, %v147
        %v184 = vmul.f32 %v148, %v148
        %v185 = vmul.f32 %v149, %v149
        %v186 = vmul.f32 %v150, %v150
        %v187 = vmul.f32 %v151, %v151
        %v188 = vmul.f32 %v152, %v152
        %v189 = vmul.f32 %v153, %v153
        %v190 = vmul.f32 %v154, %v154
        %v191 = vmul.f32 %v155, %v155
        %v192 = vmul.f32 %v156, %v156
        %v193 = vmul.f32 %v157, %v157
        %v194 = vmul.f32 %v158, %v158
        %v195 = vmul.f32 %v159, %v159
        %v196 = vmul.f32 %v160, %v160
        %v197 = vmul.f32 %v161, %v161
        %v198 = vmul.f32 %v162, %v162
        %v199 = vmul.f32 %v163, %v163
        %v200 = vmul.f32 %v164, %v164
        %v201 = vmul.f32 %v165, %v165
        %v202 = vmul.f32 %v166, %v166
        %v203 = vmul.f32 %v167, %v167
        %v204 = vmul.f32 %v168, %v168
        %v205 = vmul.f32 %v169, %v169
        %v206 = vmul.f32 %v170, %v170
        %v207 = vmul.f32 %v171, %v171
        %v208 = vmul.f32 %v172, %v172
        %v209 = vmul.f32 %v173, %v173
        %v210 = vadd.f32 %v174, %v175
        %v211 = vadd.f32 %v210, %v176
        %v212 = vadd.f32 %v211, %v177
        %v213 = vadd.f32 %v212, %v178
        %v214 = vadd.f32 %v213, %v179
        %v215 = vadd.f32 %v214, %v180
        %v216 = vadd.f32 %v215, %v181
        %v217 = vadd.f32 %v216, %v182
        %218 = vadd.xlane.f32.xlu0 %v217
        %v219 = vpop.xlane.xlu0 %218
        %v220 = vadd.f32 %v183, %v184
        %v221 = vadd.f32 %v220, %v185
        %v222 = vadd.f32 %v221, %v186
        %v223 = vadd.f32 %v222, %v187
        %v224 = vadd.f32 %v223, %v188
        %v225 = vadd.f32 %v224, %v189
        %v226 = vadd.f32 %v225, %v190
        %v227 = vadd.f32 %v226, %v191
        %228 = vadd.xlane.f32.xlu0 %v227
        %v229 = vpop.xlane.xlu0 %228
        %v230 = vadd.f32 %v192, %v193
        %v231 = vadd.f32 %v230, %v194
        %v232 = vadd.f32 %v231, %v195
        %v233 = vadd.f32 %v232, %v196
        %v234 = vadd.f32 %v233, %v197
        %v235 = vadd.f32 %v234, %v198
        %v236 = vadd.f32 %v235, %v199
        %v237 = vadd.f32 %v236, %v200
        %238 = vadd.xlane.f32.xlu0 %v237
        %v239 = vpop.xlane.xlu0 %238
        %v240 = vadd.f32 %v201, %v202
        %v241 = vadd.f32 %v240, %v203
        %v242 = vadd.f32 %v241, %v204
        %v243 = vadd.f32 %v242, %v205
        %v244 = vadd.f32 %v243, %v206
        %v245 = vadd.f32 %v244, %v207
        %v246 = vadd.f32 %v245, %v208
        %v247 = vadd.f32 %v246, %v209
        %248 = vadd.xlane.f32.xlu0 %v247
        %v249 = vpop.xlane.xlu0 %248
        %v250 = vrsqrt.pop %v219
        %v251 = vmul.f32 %v219, %v250
        %vm252 = vcmp.eq.f32.partialorder %v219, inf
        %v253 = vsel %vm252, %v219, %v251
        %vm254 = vcmp.eq.f32.partialorder %v219, 0.0
        %v255 = vand.u32 %v219, 2147483648
        %v256 = vsel %vm254, %v255, %v253
        %v257 = vrsqrt.pop %v229
        %v258 = vmul.f32 %v229, %v257
        %vm259 = vcmp.eq.f32.partialorder %v229, inf
        %v260 = vsel %vm259, %v229, %v258
        %vm261 = vcmp.eq.f32.partialorder %v229, 0.0
        %v262 = vand.u32 %v229, 2147483648
        %v263 = vsel %vm261, %v262, %v260
        %v264 = vrsqrt.pop %v239
        %v265 = vmul.f32 %v239, %v264
        %vm266 = vcmp.eq.f32.partialorder %v239, inf
        %v267 = vsel %vm266, %v239, %v265
        %vm268 = vcmp.eq.f32.partialorder %v239, 0.0
        %v269 = vand.u32 %v239, 2147483648
        %v270 = vsel %vm268, %v269, %v267
        %v271 = vrsqrt.pop %v249
        %v272 = vmul.f32 %v249, %v271
        %vm273 = vcmp.eq.f32.partialorder %v249, inf
        %v274 = vsel %vm273, %v249, %v272
        %vm275 = vcmp.eq.f32.partialorder %v249, 0.0
        %v276 = vand.u32 %v249, 2147483648
        %v277 = vsel %vm275, %v276, %v274
        %v278 = vadd.f32 %v256, 0.0001
        %v279 = vadd.f32 %v263, 0.0001
        %v280 = vadd.f32 %v270, 0.0001
        %v281 = vadd.f32 %v277, 0.0001
        %v282 = vrcp.pop %v278
        %v283 = vrcp.pop %v279
        %v284 = vrcp.pop %v280
        %v285 = vrcp.pop %v281
        %v286 = vmul.f32 %v138, %v282
        %v287 = vmul.f32 %v139, %v282
        %v288 = vmul.f32 %v140, %v282
        %v289 = vmul.f32 %v141, %v282
        %v290 = vmul.f32 %v142, %v282
        %v291 = vmul.f32 %v143, %v282
        %v292 = vmul.f32 %v144, %v282
        %v293 = vmul.f32 %v145, %v282
        %v294 = vmul.f32 %v146, %v282
        %v295 = vmul.f32 %v147, %v283
        %v296 = vmul.f32 %v148, %v283
        %v297 = vmul.f32 %v149, %v283
        %v298 = vmul.f32 %v150, %v283
        %v299 = vmul.f32 %v151, %v283
        %v300 = vmul.f32 %v152, %v283
        %v301 = vmul.f32 %v153, %v283
        %v302 = vmul.f32 %v154, %v283
        %v303 = vmul.f32 %v155, %v283
        %v304 = vmul.f32 %v156, %v284
        %v305 = vmul.f32 %v157, %v284
        %v306 = vmul.f32 %v158, %v284
        %v307 = vmul.f32 %v159, %v284
        %v308 = vmul.f32 %v160, %v284
        %v309 = vmul.f32 %v161, %v284
        %v310 = vmul.f32 %v162, %v284
        %v311 = vmul.f32 %v163, %v284
        %v312 = vmul.f32 %v164, %v284
        %v313 = vmul.f32 %v165, %v285
        %v314 = vmul.f32 %v166, %v285
        %v315 = vmul.f32 %v167, %v285
        %v316 = vmul.f32 %v168, %v285
        %v317 = vmul.f32 %v169, %v285
        %v318 = vmul.f32 %v170, %v285
        %v319 = vmul.f32 %v171, %v285
        %v320 = vmul.f32 %v172, %v285
        %v321 = vmul.f32 %v173, %v285
        %322 = vst [vmem:[%s135] sm:$0xff] %v286
        %323 = vst [vmem:[%s135 + $0x8] sm:$0xff] %v287
        %324 = vst [vmem:[%s135 + $0x10] sm:$0xff] %v288
        %325 = vst [vmem:[%s135 + $0x18] sm:$0xff] %v289
        %326 = vst [vmem:[%s135 + $0x20] sm:$0xff] %v290
        %327 = vst [vmem:[%s135 + $0x28] sm:$0xff] %v291
        %328 = vst [vmem:[%s135 + $0x30] sm:$0xff] %v292
        %329 = vst [vmem:[%s135 + $0x38] sm:$0xff] %v293
        %330 = vst [vmem:[%s135 + $0x40] sm:$0xff] %v294
        %331 = vst [vmem:[%s135 + $0x48] sm:$0xff] %v295
        %332 = vst [vmem:[%s135 + $0x50] sm:$0xff] %v296
        %333 = vst [vmem:[%s135 + $0x58] sm:$0xff] %v297
        %334 = vst [vmem:[%s135 + $0x60] sm:$0xff] %v298
        %335 = vst [vmem:[%s135 + $0x68] sm:$0xff] %v299
        %336 = vst [vmem:[%s135 + $0x70] sm:$0xff] %v300
        %337 = vst [vmem:[%s135 + $0x78] sm:$0xff] %v301
        %338 = vst [vmem:[%s135 + $0x80] sm:$0xff] %v302
        %339 = vst [vmem:[%s135 + $0x88] sm:$0xff] %v303
        %340 = vst [vmem:[%s135 + $0x90] sm:$0xff] %v304
        %341 = vst [vmem:[%s135 + $0x98] sm:$0xff] %v305
        %342 = vst [vmem:[%s135 + $0xa0] sm:$0xff] %v306
        %343 = vst [vmem:[%s135 + $0xa8] sm:$0xff] %v307
        %344 = vst [vmem:[%s135 + $0xb0] sm:$0xff] %v308
        %345 = vst [vmem:[%s135 + $0xb8] sm:$0xff] %v309
        %346 = vst [vmem:[%s135 + $0xc0] sm:$0xff] %v310
        %347 = vst [vmem:[%s135 + $0xc8] sm:$0xff] %v311
        %348 = vst [vmem:[%s135 + $0xd0] sm:$0xff] %v312
        %349 = vst [vmem:[%s135 + $0xd8] sm:$0xff] %v313
        %350 = vst [vmem:[%s135 + $0xe0] sm:$0xff] %v314
        %351 = vst [vmem:[%s135 + $0xe8] sm:$0xff] %v315
        %352 = vst [vmem:[%s135 + $0xf0] sm:$0xff] %v316
        %353 = vst [vmem:[%s135 + $0xf8] sm:$0xff] %v317
        %354 = vst [vmem:[%s135 + $0x100] sm:$0xff] %v318
        %355 = vst [vmem:[%s135 + $0x108] sm:$0xff] %v319
        %356 = vst [vmem:[%s135 + $0x110] sm:$0xff] %v320
        %357 = vst [vmem:[%s135 + $0x118] sm:$0xff] %v321
        %s358 = sand.u32 %s52, 1
        %s359 = scalar_lea.sflag [#allocation4], %s358
        %s360 = sand.u32 %s52, 1
        %s361 = smul.addr %s360, 288
        %s362 = scalar_lea.vmem [#allocation5], %s361
        // Predicated region
        $region29: #{tpu_custom_call.1} parent=23 // pred_check
          %p363 = pneg %p62
        $region30: #{tpu_custom_call.1} parent=23 // pred_check_branch
          %365 = sbr.rel (%p363) target = $region32
        $region31: #{tpu_custom_call.1} parent=23 // pred_region
          %s366 = smul.u32 4, %s18
          %s368 = ssub.s32 4608, 4608
          %369 = vsyncadd %s359, %s368
          %s370 = smul.addr %s366, 9
          %s371 = smul.addr %s370, 128
          %s372 = scalar_lea.hbm %s1, %s371
          %s373 = sshll.u32 %s362, 4
          %s374 = int_to_ptr.vmem [resolvable:$true] %s373
          %379 = dma.vmem_to_hbm [thread:$0]  %s374, 4608, %s372, %s359, 1152, 1152, 72
        $region32: #{tpu_custom_call.1} parent=23 // pred_fallthru
          _
      $region24: #{tpu_custom_call.1} parent=5 // pred_fallthru
        _
      %p380 = scmp.le.s32.totalorder 2, %s13
      // Predicated region
      $region33: #{tpu_custom_call.1} parent=5 // pred_check
        %p381 = pneg %p380
      $region34: #{tpu_custom_call.1} parent=5 // pred_check_branch
        %383 = sbr.rel (%p381) target = $region36
      $region35: #{tpu_custom_call.1} parent=5 // pred_region
        %s384 = ssub.s32 %s13, 2
        // Predicated region
        $region37: #{tpu_custom_call.1} parent=35 // pred_check
          %p385 = pneg %p68
        $region38: #{tpu_custom_call.1} parent=35 // pred_check_branch
          %387 = sbr.rel (%p385) target = $region40
        $region39: #{tpu_custom_call.1} parent=35 // pred_region
          %s388 = sand.u32 %s53, 1
          %s389 = scalar_lea.sflag [#allocation4], %s388
          %s390 = sand.u32 %s53, 1
          %s391 = smul.addr %s390, 288
          %s392 = scalar_lea.vmem [#allocation5], %s391
          %393 = dma.done %s389, 4608
        $region40: #{tpu_custom_call.1} parent=35 // pred_fallthru
          _
      $region36: #{tpu_custom_call.1} parent=5 // pred_fallthru
        _
    $region6: #{tpu_custom_call.1} parent=1 // loop_footer
      %s17 = sadd.s32 1, %s13
    $region7: #{tpu_custom_call.1} parent=1 // loop_footer_branch
      %12 = sbr.rel target = $region3
    $region8: #{tpu_custom_call.1} parent=1 // loop_exit
      _
    %394 = vsyncpa [#allocation3], 1
    %s395 = scalar_lea.sflag [#allocation3], 1
    %396 = vsyncpa %s395, 1
    %397 = vsyncpa [#allocation4], 1
    %s398 = scalar_lea.sflag [#allocation4], 1
    %399 = vsyncpa %s398, 1

</llo_original>
